<compile_context>
chip_gen: v7x
topology: tpu7x:2x2x1
jax: 0.10.0
libtpu: 0.0.40
codegen_flags: <defaults>
</compile_context>

<pallas_src>
import functools

import numpy as np

import jax
import jax.numpy as jnp
from jax.experimental import pallas as pl
from jax.experimental.pallas import tpu as pltpu


def _round_up(x, m):
    return (x + m - 1) // m * m


def _vmem_capacity_bytes():
    """Best-effort physical VMEM query; conservative fallback if unavailable."""
    try:
        return int(pltpu.get_tpu_info().vmem_capacity_bytes)
    except Exception:
        return 64 << 20          # v7x is the smallest (64 MiB per TensorCore)


def _conv_as_matrix(weight, H, W):
    """Expand the (1, 2, K, K) 'same'-padding conv weight into dense matrices
    M of shape (2, H*W, H*W) such that, for flattened channel maps
    a = avg.reshape(H*W), m = max.reshape(H*W):
        conv2d(cat([avg, max])).reshape(H*W)  ==  a @ M[0] + m @ M[1]
    Built entirely on the host with numpy (weight must be concrete)."""
    weight = np.asarray(weight, dtype=np.float32)
    K = weight.shape[-1]
    pad = K // 2
    HW = H * W
    c, kh, kw, h, w = np.meshgrid(
        np.arange(2), np.arange(K), np.arange(K), np.arange(H), np.arange(W),
        indexing="ij")
    hp = h + kh - pad
    wp = w + kw - pad
    valid = (hp >= 0) & (hp < H) & (wp >= 0) & (wp < W)
    rows = (hp * W + wp)[valid]                 # source (input) position
    cols = (h * W + w)[valid]                   # destination (output) position
    m = np.zeros((2, HW, HW), np.float32)
    m[c[valid], rows, cols] = weight[0, c[valid], kh[valid], kw[valid]]
    return m


def _spatial_attention_kernel(x_ref, m_ref, o_ref, *scratch, inv_c, n_c_steps):
    """Grid = (batch blocks, channel chunks).

    x_ref : VMEM (bb, cc, HW)    flattened input chunk
    m_ref : VMEM (2, HW, HW)     bf16 conv-as-matmul matrices (grid-invariant)
    o_ref : VMEM (bb, HW)        flattened attention map
    scratch (only when n_c_steps > 1): sum_ref, max_ref VMEM (bb, HW) f32
    """
    x = x_ref[...].astype(jnp.float32)            # (bb, cc, HW)
    part_sum = jnp.sum(x, axis=1)                 # (bb, HW)
    part_max = jnp.max(x, axis=1)                 # (bb, HW)

    def finalize(total_sum, total_max):
        avg = (total_sum * inv_c).astype(jnp.bfloat16)
        mx = total_max.astype(jnp.bfloat16)
        bb, hw = avg.shape
        rows = _round_up(bb, 8)                   # MXU-friendly sublane count
        if rows != bb:                            # static (trace-time) branch
            pad = jnp.zeros((rows - bb, hw), jnp.bfloat16)
            avg = jnp.concatenate([avg, pad], axis=0)
            mx = jnp.concatenate([mx, pad], axis=0)
        # Whole conv as two MXU matmuls (bf16 operands, f32 accumulation).
        y = jnp.dot(avg, m_ref[0], preferred_element_type=jnp.float32)
        y = y + jnp.dot(mx, m_ref[1], preferred_element_type=jnp.float32)
        y = y[:bb]
        # Hand-written sigmoid (exp + divide only -> guaranteed Mosaic lowering).
        o_ref[...] = (1.0 / (1.0 + jnp.exp(-y))).astype(o_ref.dtype)

    if n_c_steps == 1:
        # Single channel chunk: no accumulator round-trip through VMEM scratch.
        finalize(part_sum, part_max)
    else:
        sum_ref, max_ref = scratch
        c_step = pl.program_id(1)

        @pl.when(c_step == 0)
        def _():
            sum_ref[...] = part_sum
            max_ref[...] = part_max

        @pl.when(c_step != 0)
        def _():
            sum_ref[...] += part_sum
            max_ref[...] = jnp.maximum(max_ref[...], part_max)

        @pl.when(c_step == n_c_steps - 1)
        def _():
            finalize(sum_ref[...], max_ref[...])


def _plan(N, C, HW, itemsize):
    """Pick (bb, cc, single_buffer_matrix, vmem_limit_bytes)."""
    HW_l = _round_up(HW, 128)

    # Channel chunk: full C when small; otherwise a multiple-of-8 divisor, so
    # the (bb, cc, HW) block keeps a legal sublane dim while decoupling the
    # per-step VMEM cost from C (lets bb stay MXU-sized for large C).
    cc = C
    if C > 32:
        for d in (32, 24, 16, 8):
            if C % d == 0:
                cc = d
                break
    cc_l = _round_up(cc, 8)

    mat_bytes = 2 * _round_up(HW, 16) * HW_l * 2       # bf16 (2, HW, HW)
    single_buf_mat = mat_bytes > (2 << 20)             # only force when it matters
    mat_resident = mat_bytes if single_buf_mat else 2 * mat_bytes

    vmem_cap = _vmem_capacity_bytes()
    budget = min(28 << 20, vmem_cap // 3)

    def need(bb):
        bb_l = _round_up(bb, 8)
        scr = 2 * bb_l * HW_l * 4 if cc < C else 0     # sum/max accumulators
        return (2 * bb * cc_l * HW_l * itemsize        # input block, double-buffered
                + mat_resident
                + 2 * bb_l * HW_l * itemsize           # output block, double-buffered
                + scr)

    # Batch rows per grid step:
    #  * whole batch in one step when it fits and N <= 512: on single-TC
    #    v5e/v6e splitting would only re-stream the conv matrix and add
    #    per-step overhead for zero parallelism gain;
    #  * otherwise multiple-of-8 blocks of up to 512 rows, as large as the
    #    VMEM budget allows, which keeps the MXU M dimension >= 256-512 and
    #    gives >= 2 "parallel" steps for v7x's two TensorCores when N >= 1024.
    if N <= 512 and need(N) <= budget:
        bb = N
    else:
        bb = 512
        while bb > 8 and need(bb) > budget:
            bb //= 2
        if bb >= N:
            bb = N

    vmem_limit = int(need(bb) * 1.6) + (2 << 20)       # headroom for temporaries
    vmem_limit = max(8 << 20, min(vmem_limit, (vmem_cap * 3) // 4))
    return bb, cc, single_buf_mat, vmem_limit


def spatial_attention(x, weight, *, kernel_size=7):
    """x: (N, C, H, W); weight: (1, 2, K, K) concrete array -> (N, 1, H, W)."""
    assert kernel_size in (3, 7), "kernel size must be 3 or 7"
    N, C, H, W = x.shape
    K = kernel_size
    assert weight.shape == (1, 2, K, K)

    HW = H * W
    # TODO(synk): for H*W > 2048 feature maps switch to a banded/shifted-tap
    # (Toeplitz) conv instead of the dense conv-as-matmul used here.
    assert HW <= 2048, "spatial size too large for the dense conv-as-matmul path"

    # Host-built bf16 conv matrices (no device scatter at trace time).
    conv_mat = jnp.asarray(_conv_as_matrix(weight, H, W), dtype=jnp.bfloat16)

    # Metadata-only flatten of the spatial axes; no pad to a multiple of 128.
    x_flat = x.reshape(N, C, HW)

    itemsize = jnp.dtype(x.dtype).itemsize
    bb, cc, single_buf_mat, vmem_limit = _plan(N, C, HW, itemsize)
    n_c_steps = C // cc
    grid = (pl.cdiv(N, bb), n_c_steps)

    # Grid-invariant weight matrix: drop the second pipeline buffer when it is
    # big enough for the duplicate to actually cost VMEM (v7x: 64 MiB total).
    mat_kwargs = dict(pipeline_mode=pl.Buffered(1)) if single_buf_mat else {}

    in_specs = [
        pl.BlockSpec((bb, cc, HW), lambda b, c: (b, c, 0)),
        pl.BlockSpec((2, HW, HW), lambda b, c: (0, 0, 0), **mat_kwargs),
    ]
    out_spec = pl.BlockSpec((bb, HW), lambda b, c: (b, 0))
    scratch = ([pltpu.VMEM((bb, HW), jnp.float32)] * 2) if n_c_steps > 1 else []

    kernel = functools.partial(_spatial_attention_kernel,
                               inv_c=1.0 / C, n_c_steps=n_c_steps)

    out = pl.pallas_call(
        kernel,
        out_shape=jax.ShapeDtypeStruct((N, HW), x.dtype),
        grid_spec=pltpu.PrefetchScalarGridSpec(
            num_scalar_prefetch=0,
            grid=grid,
            in_specs=in_specs,
            out_specs=out_spec,
            scratch_shapes=scratch,
        ),
        compiler_params=pltpu.CompilerParams(
            dimension_semantics=("parallel", "arbitrary"),
            vmem_limit_bytes=vmem_limit,
        ),
    )(x_flat, conv_mat)

    return out.reshape(N, 1, H, W)


def _reference(x, weight, kernel_size=7):
    """Pure-JAX reference mirroring the PyTorch forward."""
    pad = kernel_size // 2
    avg = jnp.mean(x, axis=1, keepdims=True)
    mx = jnp.max(x, axis=1, keepdims=True)
    cat = jnp.concatenate([avg, mx], axis=1)            # (N, 2, H, W)
    y = jax.lax.conv_general_dilated(
        cat, weight, window_strides=(1, 1),
        padding=((pad, pad), (pad, pad)),
        dimension_numbers=("NCHW", "OIHW", "NCHW"))
    return jax.nn.sigmoid(y)


if __name__ == "__main__":
    key = jax.random.PRNGKey(0)
    kx, kw = jax.random.split(key)

    N, C, H, W = 2, 4, 16, 16
    K = 7

    x = jax.random.normal(kx, (N, C, H, W), dtype=jnp.float32)

    # Deterministic init matching nn.Conv2d default (kaiming-uniform bound).
    fan_in = 2 * K * K
    bound = 1.0 / (fan_in ** 0.5)
    weight = jax.random.uniform(kw, (1, 2, K, K), dtype=jnp.float32,
                                minval=-bound, maxval=bound)

    out = spatial_attention(x, weight, kernel_size=K)
    out = jax.block_until_ready(out)

    ref = _reference(x, weight, kernel_size=K)
    assert out.shape == (N, 1, H, W)
    # bf16 MXU operands (weights + avg/max maps, f32 accumulation) dominate the
    # error budget; real indexing/padding bugs would show up as O(0.1-1) errors.
    err = float(jnp.max(jnp.abs(out - ref)))
    assert err < 1e-2, f"mismatch vs reference: max abs err = {err}"

    print("KERNEL_OK")
</pallas_src>

<mosaic_0001>
module attributes {stable_mosaic.version = 11 : i64} {
  func.func @_spatial_attention_kernel(%arg0: i32, %arg1: i32, %arg2: memref<2x4x256xf32, #tpu.memory_space<vmem>>, %arg3: memref<2x256x256xbf16, #tpu.memory_space<vmem>>, %arg4: memref<2x256xf32, #tpu.memory_space<vmem>>) attributes {dimension_semantics = [#tpu.dimension_semantics<parallel>, #tpu.dimension_semantics<arbitrary>], iteration_bounds = array<i64: 1, 1>, scalar_prefetch = 0 : i64, scratch_operands = 0 : i64, tpu.core_type = #tpu.core_type<tc>, window_params = [{transform_indices = @transform_0, window_bounds = array<i64: 2, 4, 256>}, {pipeline_mode = #tpu.pipeline_mode<synchronous>, transform_indices = @transform_1, window_bounds = array<i64: 2, 256, 256>}, {transform_indices = @transform_2, window_bounds = array<i64: 2, 256>}]} {
    %c0 = arith.constant 0 : index
    %c0_0 = arith.constant 0 : index
    %c0_1 = arith.constant 0 : index
    %0 = vector.load %arg2[%c0, %c0_0, %c0_1] : memref<2x4x256xf32, #tpu.memory_space<vmem>>, vector<2x4x256xf32>
    %cst = arith.constant dense<0.000000e+00> : vector<2x256xf32>
    %1 = vector.multi_reduction <add>, %0, %cst [1] : vector<2x4x256xf32> to vector<2x256xf32>
    %cst_2 = arith.constant dense<0xFF800000> : vector<2x256xf32>
    %2 = vector.multi_reduction <maximumf>, %0, %cst_2 [1] : vector<2x4x256xf32> to vector<2x256xf32>
    %cst_3 = arith.constant 2.500000e-01 : f32
    %3 = vector.broadcast %cst_3 : f32 to vector<2x256xf32>
    %4 = arith.mulf %1, %3 : vector<2x256xf32>
    %5 = arith.truncf %4 : vector<2x256xf32> to vector<2x256xbf16>
    %6 = arith.truncf %2 : vector<2x256xf32> to vector<2x256xbf16>
    %cst_4 = arith.constant 0.000000e+00 : bf16
    %7 = vector.broadcast %cst_4 : bf16 to vector<6x256xbf16>
    %8 = tpu.concatenate %5, %7 in 0 : vector<2x256xbf16>, vector<6x256xbf16> -> vector<8x256xbf16>
    %9 = tpu.concatenate %6, %7 in 0 : vector<2x256xbf16>, vector<6x256xbf16> -> vector<8x256xbf16>
    %c0_5 = arith.constant 0 : index
    %c0_6 = arith.constant 0 : index
    %c0_7 = arith.constant 0 : index
    %10 = vector.load %arg3[%c0_5, %c0_6, %c0_7] : memref<2x256x256xbf16, #tpu.memory_space<vmem>>, vector<1x256x256xbf16>
    %11 = vector.shape_cast %10 : vector<1x256x256xbf16> to vector<256x256xbf16>
    %cst_8 = arith.constant dense<0.000000e+00> : vector<8x256xf32>
    %12 = tpu.matmul %8, %11, %cst_8 {dimension_numbers = #tpu.dot_dimension_numbers<[1], [0], [0], [1], [0, 0, 1, 1], [], []>} : vector<8x256xbf16>, vector<256x256xbf16>, vector<8x256xf32> -> vector<8x256xf32>
    %c1 = arith.constant 1 : index
    %c0_9 = arith.constant 0 : index
    %c0_10 = arith.constant 0 : index
    %13 = vector.load %arg3[%c1, %c0_9, %c0_10] : memref<2x256x256xbf16, #tpu.memory_space<vmem>>, vector<1x256x256xbf16>
    %14 = vector.shape_cast %13 : vector<1x256x256xbf16> to vector<256x256xbf16>
    %cst_11 = arith.constant dense<0.000000e+00> : vector<8x256xf32>
    %15 = tpu.matmul %9, %14, %cst_11 {dimension_numbers = #tpu.dot_dimension_numbers<[1], [0], [0], [1], [0, 0, 1, 1], [], []>} : vector<8x256xbf16>, vector<256x256xbf16>, vector<8x256xf32> -> vector<8x256xf32>
    %16 = arith.addf %12, %15 : vector<8x256xf32>
    %17 = vector.extract_strided_slice %16 {offsets = [0, 0], sizes = [2, 256], strides = [1, 1]} : vector<8x256xf32> to vector<2x256xf32>
    %cst_12 = arith.constant 0.000000e+00 : f32
    %18 = vector.broadcast %cst_12 : f32 to vector<2x256xf32>
    %19 = arith.subf %18, %17 : vector<2x256xf32>
    %20 = math.exp %19 : vector<2x256xf32>
    %cst_13 = arith.constant 1.000000e+00 : f32
    %21 = vector.broadcast %cst_13 : f32 to vector<2x256xf32>
    %22 = arith.addf %21, %20 : vector<2x256xf32>
    %cst_14 = arith.constant 1.000000e+00 : f32
    %23 = vector.broadcast %cst_14 : f32 to vector<2x256xf32>
    %24 = arith.divf %23, %22 : vector<2x256xf32>
    %c0_15 = arith.constant 0 : index
    %c0_16 = arith.constant 0 : index
    %25 = vector.load %arg4[%c0_15, %c0_16] : memref<2x256xf32, #tpu.memory_space<vmem>>, vector<2x256xf32>
    tpu.vector_store %arg4[%c0_15, %c0_16], %24 {strides = array<i32>} : memref<2x256xf32, #tpu.memory_space<vmem>>, vector<2x256xf32>,
    return
  }
  func.func @transform_0(%arg0: i32, %arg1: i32) -> (i32, i32, i32) {
    %c0_i32 = arith.constant 0 : i32
    %c0_i32_0 = arith.constant 0 : i32
    return %arg0, %arg1, %c0_i32 : i32, i32, i32
  }
  func.func @transform_1(%arg0: i32, %arg1: i32) -> (i32, i32, i32) {
    %c0_i32 = arith.constant 0 : i32
    %c0_i32_0 = arith.constant 0 : i32
    %c0_i32_1 = arith.constant 0 : i32
    %c0_i32_2 = arith.constant 0 : i32
    return %c0_i32, %c0_i32_0, %c0_i32_1 : i32, i32, i32
  }
  func.func @transform_2(%arg0: i32, %arg1: i32) -> (i32, i32) {
    %c0_i32 = arith.constant 0 : i32
    %c0_i32_0 = arith.constant 0 : i32
    return %arg0, %c0_i32 : i32, i32
  }
}

</mosaic_0001>

<llo_original>
// kernel: tpu_custom_call.1
$region0: #{tpu_custom_call.1}
  #allocation0 [shape = 'u32[]', space=smem, size = 0x4, offset = 0x4, fixed_abs, tag = 'smem constant byte address 0x4 - core index']
  #allocation1 [shape = 'u32[144,128]{1,0:T(1,128)}', space=vmem, size = 0x12000, scoped, tag = 'internal scratch']
  %s0 = inlined_call_operand.hbm [shape: f32[2,4,256], index: 0, kind: input, shape index: {}]
  %s1 = inlined_call_operand.hbm [shape: bf16[2,256,256], index: 1, kind: input, shape index: {}]
  %s2 = inlined_call_operand.hbm [shape: f32[2,256], index: 2, kind: output, shape index: {}]
  %s3 = sld [smem:[#allocation0]]
  $region26: #{tpu_custom_call.1} parent=0
    _
  %s5 = ssub.s32 1, %s3
  %s6 = scalar_select 0, %s5, %s3
  $region1: #{tpu_custom_call.1} parent=0
    #allocation2 [shape = 'u8[8192]{0}', space=vmem, size = 0x2000, scoped, tag = 'input window, operand 0, single buffered']
    #allocation3 [shape = 's32[1]{0}', space=sflag, size = 0x4, scoped, tag = 'scoped memory for tpu_custom_call.1']
    #allocation4 [shape = 's32[1]{0}', space=sflag, size = 0x4, scoped, tag = 'scoped memory for tpu_custom_call.1']
    #allocation5 [shape = 'u8[262144]{0}', space=vmem, size = 0x40000, scoped, tag = 'input window, operand 1, single buffered']
    #allocation6 [shape = 's32[1]{0}', space=sflag, size = 0x4, scoped, tag = 'scoped memory for tpu_custom_call.1']
    #allocation7 [shape = 'u8[2048]{0}', space=vmem, size = 0x800, scoped, tag = 'output window, operand 0, single buffered']
    %7 = vsyncpa [#allocation3], 0
    %8 = vsyncpa [#allocation6], 0
    %9 = vsyncpa [#allocation4], 0
    // Predicated region
    $region2: #{tpu_custom_call.1} parent=1 // pred_check
      _
    $region3: #{tpu_custom_call.1} parent=1 // pred_check_branch
      %11 = sbr.rel (0) target = $region5
    $region4: #{tpu_custom_call.1} parent=1 // pred_region
      %s13 = ssub.s32 256, 256
      %14 = vsyncadd [#allocation3], %s13
      %s15 = sshll.u32 [#allocation2], 4
      %s16 = int_to_ptr.vmem [resolvable:$true] %s15
      %21 = dma.hbm_to_vmem [thread:$0]  %s0, 256, %s16, [#allocation3], 128, 128, 8
    $region5: #{tpu_custom_call.1} parent=1 // pred_fallthru
      _
    // Predicated region
    $region6: #{tpu_custom_call.1} parent=1 // pred_check
      _
    $region7: #{tpu_custom_call.1} parent=1 // pred_check_branch
      %23 = sbr.rel (0) target = $region9
    $region8: #{tpu_custom_call.1} parent=1 // pred_region
      %s25 = ssub.s32 8192, 8192
      %26 = vsyncadd [#allocation6], %s25
      %s27 = sshll.u32 [#allocation5], 4
      %s28 = int_to_ptr.vmem [resolvable:$true] %s27
      %33 = dma.hbm_to_vmem [thread:$0]  %s1, 8192, %s28, [#allocation6], 128, 128, 8
    $region9: #{tpu_custom_call.1} parent=1 // pred_fallthru
      _
    // Predicated region
    $region10: #{tpu_custom_call.1} parent=1 // pred_check
      _
    $region11: #{tpu_custom_call.1} parent=1 // pred_check_branch
      %35 = sbr.rel (0) target = $region13
    $region12: #{tpu_custom_call.1} parent=1 // pred_region
      %36 = dma.done [#allocation3], 256
    $region13: #{tpu_custom_call.1} parent=1 // pred_fallthru
      _
    // Predicated region
    $region14: #{tpu_custom_call.1} parent=1 // pred_check
      _
    $region15: #{tpu_custom_call.1} parent=1 // pred_check_branch
      %38 = sbr.rel (0) target = $region17
    $region16: #{tpu_custom_call.1} parent=1 // pred_region
      %39 = dma.done [#allocation6], 8192
    $region17: #{tpu_custom_call.1} parent=1 // pred_fallthru
      _
    %v41 = vld [vmem:[#allocation2] sm:$0xff]
    %v42 = vld [vmem:[#allocation2 + $0x8] sm:$0xff]
    %v45 = vcombine.high %v41, %v41
    %v46 = vcombine.high %v42, %v42
    %vm49 = vcmask 1043456
    %v50 = vsel %vm49, %v41, 0.0
    %v51 = vrot.slane %v50, 4
    %v52 = vadd.f32 %v50, %v51
    %v53 = vrot.slane %v52, 2
    %v54 = vadd.f32 %v52, %v53
    %v55 = vrot.slane %v54, 1
    %v56 = vadd.f32 %v54, %v55
    %v57 = vsel %vm49, %v45, 0.0
    %v58 = vrot.slane %v57, 4
    %v59 = vadd.f32 %v57, %v58
    %v60 = vrot.slane %v59, 2
    %v61 = vadd.f32 %v59, %v60
    %v62 = vrot.slane %v61, 1
    %v63 = vadd.f32 %v61, %v62
    %v64 = vsel %vm49, %v42, 0.0
    %v65 = vrot.slane %v64, 4
    %v66 = vadd.f32 %v64, %v65
    %v67 = vrot.slane %v66, 2
    %v68 = vadd.f32 %v66, %v67
    %v69 = vrot.slane %v68, 1
    %v70 = vadd.f32 %v68, %v69
    %v71 = vsel %vm49, %v46, 0.0
    %v72 = vrot.slane %v71, 4
    %v73 = vadd.f32 %v71, %v72
    %v74 = vrot.slane %v73, 2
    %v75 = vadd.f32 %v73, %v74
    %v76 = vrot.slane %v75, 1
    %v77 = vadd.f32 %v75, %v76
    %v78 = vsel %vm49, %v41, -inf
    %v79 = vrot.slane %v78, 4
    %v80 = vmax.f32 %v78, %v79
    %v81 = vrot.slane %v80, 2
    %v82 = vmax.f32 %v80, %v81
    %v83 = vrot.slane %v82, 1
    %v84 = vmax.f32 %v82, %v83
    %v85 = vsel %vm49, %v45, -inf
    %v86 = vrot.slane %v85, 4
    %v87 = vmax.f32 %v85, %v86
    %v88 = vrot.slane %v87, 2
    %v89 = vmax.f32 %v87, %v88
    %v90 = vrot.slane %v89, 1
    %v91 = vmax.f32 %v89, %v90
    %v92 = vsel %vm49, %v42, -inf
    %v93 = vrot.slane %v92, 4
    %v94 = vmax.f32 %v92, %v93
    %v95 = vrot.slane %v94, 2
    %v96 = vmax.f32 %v94, %v95
    %v97 = vrot.slane %v96, 1
    %v98 = vmax.f32 %v96, %v97
    %v99 = vsel %vm49, %v46, -inf
    %v100 = vrot.slane %v99, 4
    %v101 = vmax.f32 %v99, %v100
    %v102 = vrot.slane %v101, 2
    %v103 = vmax.f32 %v101, %v102
    %v104 = vrot.slane %v103, 1
    %v105 = vmax.f32 %v103, %v104
    %v106 = vmul.f32 %v56, 0.25
    %v107 = vmul.f32 %v63, 0.25
    %v108 = vmul.f32 %v70, 0.25
    %v109 = vmul.f32 %v77, 0.25
    %v110 = vpack.c.bf16 %v106, %v106
    %v111 = vpack.c.bf16 %v107, %v107
    %v112 = vpack.c.bf16 %v108, %v108
    %v113 = vpack.c.bf16 %v109, %v109
    %v114 = vpack.c.bf16 %v84, %v84
    %v115 = vpack.c.bf16 %v91, %v91
    %v116 = vpack.c.bf16 %v98, %v98
    %v117 = vpack.c.bf16 %v105, %v105
    %v122 = vunpack.c.l.b16 %v110
    %v123 = vunpack.c.l.b16 %v111
    %v124 = vunpack.c.l.b16 %v112
    %v125 = vunpack.c.l.b16 %v113
    %vm126 = vcmask 1041409
    %v127 = vsel %vm126, %v124, %v122
    %v128 = vsel %vm126, %v125, %v123
    %v129 = vpack.c.b16 %v127, %v127
    %v130 = vpack.c.b16 %v128, %v128
    %vm131 = vcmask 1040384
    %v134 = vsel %vm131, %v129, 0
    %v137 = vsel %vm131, %v130, 0
    %v143 = vunpack.c.l.b16 %v114
    %v144 = vunpack.c.l.b16 %v115
    %v145 = vunpack.c.l.b16 %v116
    %v146 = vunpack.c.l.b16 %v117
    %v147 = vsel %vm126, %v145, %v143
    %v148 = vsel %vm126, %v146, %v144
    %v149 = vpack.c.b16 %v147, %v147
    %v150 = vpack.c.b16 %v148, %v148
    %v152 = vsel %vm131, %v149, 0
    %v155 = vsel %vm131, %v150, 0
    %v157 = vld [vmem:[#allocation5] sm:$0xff]
    %v158 = vld [vmem:[#allocation5 + $0x8] sm:$0xff]
    %v159 = vld [vmem:[#allocation5 + $0x10] sm:$0xff]
    %v160 = vld [vmem:[#allocation5 + $0x18] sm:$0xff]
    %v161 = vld [vmem:[#allocation5 + $0x20] sm:$0xff]
    %v162 = vld [vmem:[#allocation5 + $0x28] sm:$0xff]
    %v163 = vld [vmem:[#allocation5 + $0x30] sm:$0xff]
    %v164 = vld [vmem:[#allocation5 + $0x38] sm:$0xff]
    %v165 = vld [vmem:[#allocation5 + $0x40] sm:$0xff]
    %v166 = vld [vmem:[#allocation5 + $0x48] sm:$0xff]
    %v167 = vld [vmem:[#allocation5 + $0x50] sm:$0xff]
    %v168 = vld [vmem:[#allocation5 + $0x58] sm:$0xff]
    %v169 = vld [vmem:[#allocation5 + $0x60] sm:$0xff]
    %v170 = vld [vmem:[#allocation5 + $0x68] sm:$0xff]
    %v171 = vld [vmem:[#allocation5 + $0x70] sm:$0xff]
    %v172 = vld [vmem:[#allocation5 + $0x78] sm:$0xff]
    %v173 = vld [vmem:[#allocation5 + $0x80] sm:$0xff]
    %v174 = vld [vmem:[#allocation5 + $0x88] sm:$0xff]
    %v175 = vld [vmem:[#allocation5 + $0x90] sm:$0xff]
    %v176 = vld [vmem:[#allocation5 + $0x98] sm:$0xff]
    %v177 = vld [vmem:[#allocation5 + $0xa0] sm:$0xff]
    %v178 = vld [vmem:[#allocation5 + $0xa8] sm:$0xff]
    %v179 = vld [vmem:[#allocation5 + $0xb0] sm:$0xff]
    %v180 = vld [vmem:[#allocation5 + $0xb8] sm:$0xff]
    %v181 = vld [vmem:[#allocation5 + $0xc0] sm:$0xff]
    %v182 = vld [vmem:[#allocation5 + $0xc8] sm:$0xff]
    %v183 = vld [vmem:[#allocation5 + $0xd0] sm:$0xff]
    %v184 = vld [vmem:[#allocation5 + $0xd8] sm:$0xff]
    %v185 = vld [vmem:[#allocation5 + $0xe0] sm:$0xff]
    %v186 = vld [vmem:[#allocation5 + $0xe8] sm:$0xff]
    %v187 = vld [vmem:[#allocation5 + $0xf0] sm:$0xff]
    %v188 = vld [vmem:[#allocation5 + $0xf8] sm:$0xff]
    %s189 = scalar_lea.vmem [#allocation5], 256
    %v190 = vld [vmem:[%s189] sm:$0xff]
    %v191 = vld [vmem:[%s189 + $0x8] sm:$0xff]
    %v192 = vld [vmem:[%s189 + $0x10] sm:$0xff]
    %v193 = vld [vmem:[%s189 + $0x18] sm:$0xff]
    %v194 = vld [vmem:[%s189 + $0x20] sm:$0xff]
    %v195 = vld [vmem:[%s189 + $0x28] sm:$0xff]
    %v196 = vld [vmem:[%s189 + $0x30] sm:$0xff]
    %v197 = vld [vmem:[%s189 + $0x38] sm:$0xff]
    %v198 = vld [vmem:[%s189 + $0x40] sm:$0xff]
    %v199 = vld [vmem:[%s189 + $0x48] sm:$0xff]
    %v200 = vld [vmem:[%s189 + $0x50] sm:$0xff]
    %v201 = vld [vmem:[%s189 + $0x58] sm:$0xff]
    %v202 = vld [vmem:[%s189 + $0x60] sm:$0xff]
    %v203 = vld [vmem:[%s189 + $0x68] sm:$0xff]
    %v204 = vld [vmem:[%s189 + $0x70] sm:$0xff]
    %v205 = vld [vmem:[%s189 + $0x78] sm:$0xff]
    %v206 = vld [vmem:[%s189 + $0x80] sm:$0xff]
    %v207 = vld [vmem:[%s189 + $0x88] sm:$0xff]
    %v208 = vld [vmem:[%s189 + $0x90] sm:$0xff]
    %v209 = vld [vmem:[%s189 + $0x98] sm:$0xff]
    %v210 = vld [vmem:[%s189 + $0xa0] sm:$0xff]
    %v211 = vld [vmem:[%s189 + $0xa8] sm:$0xff]
    %v212 = vld [vmem:[%s189 + $0xb0] sm:$0xff]
    %v213 = vld [vmem:[%s189 + $0xb8] sm:$0xff]
    %v214 = vld [vmem:[%s189 + $0xc0] sm:$0xff]
    %v215 = vld [vmem:[%s189 + $0xc8] sm:$0xff]
    %v216 = vld [vmem:[%s189 + $0xd0] sm:$0xff]
    %v217 = vld [vmem:[%s189 + $0xd8] sm:$0xff]
    %v218 = vld [vmem:[%s189 + $0xe0] sm:$0xff]
    %v219 = vld [vmem:[%s189 + $0xe8] sm:$0xff]
    %v220 = vld [vmem:[%s189 + $0xf0] sm:$0xff]
    %v221 = vld [vmem:[%s189 + $0xf8] sm:$0xff]
    %v254 = vunpack.c.l.b16 %v190
    %v255 = vunpack.c.h.b16 %v190
    %v256 = vunpack.c.l.b16 %v191
    %v257 = vunpack.c.h.b16 %v191
    %v258 = vunpack.c.l.b16 %v192
    %v259 = vunpack.c.h.b16 %v192
    %v260 = vunpack.c.l.b16 %v193
    %v261 = vunpack.c.h.b16 %v193
    %v262 = vunpack.c.l.b16 %v194
    %v263 = vunpack.c.h.b16 %v194
    %v264 = vunpack.c.l.b16 %v195
    %v265 = vunpack.c.h.b16 %v195
    %v266 = vunpack.c.l.b16 %v196
    %v267 = vunpack.c.h.b16 %v196
    %v268 = vunpack.c.l.b16 %v197
    %v269 = vunpack.c.h.b16 %v197
    %v270 = vunpack.c.l.b16 %v198
    %v271 = vunpack.c.h.b16 %v198
    %v272 = vunpack.c.l.b16 %v199
    %v273 = vunpack.c.h.b16 %v199
    %v274 = vunpack.c.l.b16 %v200
    %v275 = vunpack.c.h.b16 %v200
    %v276 = vunpack.c.l.b16 %v201
    %v277 = vunpack.c.h.b16 %v201
    %v278 = vunpack.c.l.b16 %v202
    %v279 = vunpack.c.h.b16 %v202
    %v280 = vunpack.c.l.b16 %v203
    %v281 = vunpack.c.h.b16 %v203
    %v282 = vunpack.c.l.b16 %v204
    %v283 = vunpack.c.h.b16 %v204
    %v284 = vunpack.c.l.b16 %v205
    %v285 = vunpack.c.h.b16 %v205
    %v286 = vunpack.c.l.b16 %v206
    %v287 = vunpack.c.h.b16 %v206
    %v288 = vunpack.c.l.b16 %v207
    %v289 = vunpack.c.h.b16 %v207
    %v290 = vunpack.c.l.b16 %v208
    %v291 = vunpack.c.h.b16 %v208
    %v292 = vunpack.c.l.b16 %v209
    %v293 = vunpack.c.h.b16 %v209
    %v294 = vunpack.c.l.b16 %v210
    %v295 = vunpack.c.h.b16 %v210
    %v296 = vunpack.c.l.b16 %v211
    %v297 = vunpack.c.h.b16 %v211
    %v298 = vunpack.c.l.b16 %v212
    %v299 = vunpack.c.h.b16 %v212
    %v300 = vunpack.c.l.b16 %v213
    %v301 = vunpack.c.h.b16 %v213
    %v302 = vunpack.c.l.b16 %v214
    %v303 = vunpack.c.h.b16 %v214
    %v304 = vunpack.c.l.b16 %v215
    %v305 = vunpack.c.h.b16 %v215
    %v306 = vunpack.c.l.b16 %v216
    %v307 = vunpack.c.h.b16 %v216
    %v308 = vunpack.c.l.b16 %v217
    %v309 = vunpack.c.h.b16 %v217
    %v310 = vunpack.c.l.b16 %v218
    %v311 = vunpack.c.h.b16 %v218
    %v312 = vunpack.c.l.b16 %v219
    %v313 = vunpack.c.h.b16 %v219
    %v314 = vunpack.c.l.b16 %v220
    %v315 = vunpack.c.h.b16 %v220
    %v316 = vunpack.c.l.b16 %v221
    %v317 = vunpack.c.h.b16 %v221
    %v318 = vpack.c.b16 %v256, %v254
    %v319 = vpack.c.b16 %v257, %v255
    %v320 = vpack.c.b16 %v260, %v258
    %v321 = vpack.c.b16 %v261, %v259
    %v322 = vpack.c.b16 %v264, %v262
    %v323 = vpack.c.b16 %v265, %v263
    %v324 = vpack.c.b16 %v268, %v266
    %v325 = vpack.c.b16 %v269, %v267
    %v326 = vpack.c.b16 %v272, %v270
    %v327 = vpack.c.b16 %v273, %v271
    %v328 = vpack.c.b16 %v276, %v274
    %v329 = vpack.c.b16 %v277, %v275
    %v330 = vpack.c.b16 %v280, %v278
    %v331 = vpack.c.b16 %v281, %v279
    %v332 = vpack.c.b16 %v284, %v282
    %v333 = vpack.c.b16 %v285, %v283
    %v334 = vpack.c.b16 %v288, %v286
    %v335 = vpack.c.b16 %v289, %v287
    %v336 = vpack.c.b16 %v292, %v290
    %v337 = vpack.c.b16 %v293, %v291
    %v338 = vpack.c.b16 %v296, %v294
    %v339 = vpack.c.b16 %v297, %v295
    %v340 = vpack.c.b16 %v300, %v298
    %v341 = vpack.c.b16 %v301, %v299
    %v342 = vpack.c.b16 %v304, %v302
    %v343 = vpack.c.b16 %v305, %v303
    %v344 = vpack.c.b16 %v308, %v306
    %v345 = vpack.c.b16 %v309, %v307
    %v346 = vpack.c.b16 %v312, %v310
    %v347 = vpack.c.b16 %v313, %v311
    %v348 = vpack.c.b16 %v316, %v314
    %v349 = vpack.c.b16 %v317, %v315
    %382 = vmatprep.subr.bf16.mxu0 %v319
    %383 = vmatpush1.bf16.msra.mxu0 %v318
    %384 = vmatprep.subr.bf16.mxu0 %v321
    %385 = vmatpush1.bf16.msra.mxu0 %v320
    %386 = vmatprep.subr.bf16.mxu0 %v323
    %387 = vmatpush1.bf16.msra.mxu0 %v322
    %388 = vmatprep.subr.bf16.mxu0 %v325
    %389 = vmatpush1.bf16.msra.mxu0 %v324
    %390 = vmatprep.subr.bf16.mxu0 %v327
    %391 = vmatpush1.bf16.msra.mxu0 %v326
    %392 = vmatprep.subr.bf16.mxu0 %v329
    %393 = vmatpush1.bf16.msra.mxu0 %v328
    %394 = vmatprep.subr.bf16.mxu0 %v331
    %395 = vmatpush1.bf16.msra.mxu0 %v330
    %396 = vmatprep.subr.bf16.mxu0 %v333
    %397 = vmatpush1.bf16.msra.mxu0 %v332
    %398 = vmatprep.subr.bf16.mxu0 %v335
    %399 = vmatpush1.bf16.msra.mxu0 %v334
    %400 = vmatprep.subr.bf16.mxu0 %v337
    %401 = vmatpush1.bf16.msra.mxu0 %v336
    %402 = vmatprep.subr.bf16.mxu0 %v339
    %403 = vmatpush1.bf16.msra.mxu0 %v338
    %404 = vmatprep.subr.bf16.mxu0 %v341
    %405 = vmatpush1.bf16.msra.mxu0 %v340
    %406 = vmatprep.subr.bf16.mxu0 %v343
    %407 = vmatpush1.bf16.msra.mxu0 %v342
    %408 = vmatprep.subr.bf16.mxu0 %v345
    %409 = vmatpush1.bf16.msra.mxu0 %v344
    %410 = vmatprep.subr.bf16.mxu0 %v347
    %411 = vmatpush1.bf16.msra.mxu0 %v346
    %412 = vmatprep.subr.bf16.mxu0 %v349
    %413 = vmatpush1.bf16.msra.mxu0 %v348
    %414 = vmatprep.mubr.bf16.mxu0 %v155
    %415 = vmatmul.mubr.bf16.gmra.mrb[0].mxu0 %v152
    %v416 = vpop.f32.mrb[0].mxu0
    %v417 = vadd.f32 0.0, %v416
    %v418 = vpop.f32.mrb[0].mxu0
    %v419 = vadd.f32 0.0, %v418
    %v420 = vpop.f32.mrb[0].mxu0
    %v421 = vpop.f32.mrb[0].mxu0
    %422 = vdwg.mxu0
    %v455 = vunpack.c.l.b16 %v157
    %v456 = vunpack.c.h.b16 %v157
    %v457 = vunpack.c.l.b16 %v158
    %v458 = vunpack.c.h.b16 %v158
    %v459 = vunpack.c.l.b16 %v159
    %v460 = vunpack.c.h.b16 %v159
    %v461 = vunpack.c.l.b16 %v160
    %v462 = vunpack.c.h.b16 %v160
    %v463 = vunpack.c.l.b16 %v161
    %v464 = vunpack.c.h.b16 %v161
    %v465 = vunpack.c.l.b16 %v162
    %v466 = vunpack.c.h.b16 %v162
    %v467 = vunpack.c.l.b16 %v163
    %v468 = vunpack.c.h.b16 %v163
    %v469 = vunpack.c.l.b16 %v164
    %v470 = vunpack.c.h.b16 %v164
    %v471 = vunpack.c.l.b16 %v165
    %v472 = vunpack.c.h.b16 %v165
    %v473 = vunpack.c.l.b16 %v166
    %v474 = vunpack.c.h.b16 %v166
    %v475 = vunpack.c.l.b16 %v167
    %v476 = vunpack.c.h.b16 %v167
    %v477 = vunpack.c.l.b16 %v168
    %v478 = vunpack.c.h.b16 %v168
    %v479 = vunpack.c.l.b16 %v169
    %v480 = vunpack.c.h.b16 %v169
    %v481 = vunpack.c.l.b16 %v170
    %v482 = vunpack.c.h.b16 %v170
    %v483 = vunpack.c.l.b16 %v171
    %v484 = vunpack.c.h.b16 %v171
    %v485 = vunpack.c.l.b16 %v172
    %v486 = vunpack.c.h.b16 %v172
    %v487 = vunpack.c.l.b16 %v173
    %v488 = vunpack.c.h.b16 %v173
    %v489 = vunpack.c.l.b16 %v174
    %v490 = vunpack.c.h.b16 %v174
    %v491 = vunpack.c.l.b16 %v175
    %v492 = vunpack.c.h.b16 %v175
    %v493 = vunpack.c.l.b16 %v176
    %v494 = vunpack.c.h.b16 %v176
    %v495 = vunpack.c.l.b16 %v177
    %v496 = vunpack.c.h.b16 %v177
    %v497 = vunpack.c.l.b16 %v178
    %v498 = vunpack.c.h.b16 %v178
    %v499 = vunpack.c.l.b16 %v179
    %v500 = vunpack.c.h.b16 %v179
    %v501 = vunpack.c.l.b16 %v180
    %v502 = vunpack.c.h.b16 %v180
    %v503 = vunpack.c.l.b16 %v181
    %v504 = vunpack.c.h.b16 %v181
    %v505 = vunpack.c.l.b16 %v182
    %v506 = vunpack.c.h.b16 %v182
    %v507 = vunpack.c.l.b16 %v183
    %v508 = vunpack.c.h.b16 %v183
    %v509 = vunpack.c.l.b16 %v184
    %v510 = vunpack.c.h.b16 %v184
    %v511 = vunpack.c.l.b16 %v185
    %v512 = vunpack.c.h.b16 %v185
    %v513 = vunpack.c.l.b16 %v186
    %v514 = vunpack.c.h.b16 %v186
    %v515 = vunpack.c.l.b16 %v187
    %v516 = vunpack.c.h.b16 %v187
    %v517 = vunpack.c.l.b16 %v188
    %v518 = vunpack.c.h.b16 %v188
    %v519 = vpack.c.b16 %v457, %v455
    %v520 = vpack.c.b16 %v458, %v456
    %v521 = vpack.c.b16 %v461, %v459
    %v522 = vpack.c.b16 %v462, %v460
    %v523 = vpack.c.b16 %v465, %v463
    %v524 = vpack.c.b16 %v466, %v464
    %v525 = vpack.c.b16 %v469, %v467
    %v526 = vpack.c.b16 %v470, %v468
    %v527 = vpack.c.b16 %v473, %v471
    %v528 = vpack.c.b16 %v474, %v472
    %v529 = vpack.c.b16 %v477, %v475
    %v530 = vpack.c.b16 %v478, %v476
    %v531 = vpack.c.b16 %v481, %v479
    %v532 = vpack.c.b16 %v482, %v480
    %v533 = vpack.c.b16 %v485, %v483
    %v534 = vpack.c.b16 %v486, %v484
    %v535 = vpack.c.b16 %v489, %v487
    %v536 = vpack.c.b16 %v490, %v488
    %v537 = vpack.c.b16 %v493, %v491
    %v538 = vpack.c.b16 %v494, %v492
    %v539 = vpack.c.b16 %v497, %v495
    %v540 = vpack.c.b16 %v498, %v496
    %v541 = vpack.c.b16 %v501, %v499
    %v542 = vpack.c.b16 %v502, %v500
    %v543 = vpack.c.b16 %v505, %v503
    %v544 = vpack.c.b16 %v506, %v504
    %v545 = vpack.c.b16 %v509, %v507
    %v546 = vpack.c.b16 %v510, %v508
    %v547 = vpack.c.b16 %v513, %v511
    %v548 = vpack.c.b16 %v514, %v512
    %v549 = vpack.c.b16 %v517, %v515
    %v550 = vpack.c.b16 %v518, %v516
    %583 = vmatprep.subr.bf16.mxu0 %v520
    %584 = vmatpush1.bf16.msra.mxu0 %v519
    %585 = vmatprep.subr.bf16.mxu0 %v522
    %586 = vmatpush1.bf16.msra.mxu0 %v521
    %587 = vmatprep.subr.bf16.mxu0 %v524
    %588 = vmatpush1.bf16.msra.mxu0 %v523
    %589 = vmatprep.subr.bf16.mxu0 %v526
    %590 = vmatpush1.bf16.msra.mxu0 %v525
    %591 = vmatprep.subr.bf16.mxu0 %v528
    %592 = vmatpush1.bf16.msra.mxu0 %v527
    %593 = vmatprep.subr.bf16.mxu0 %v530
    %594 = vmatpush1.bf16.msra.mxu0 %v529
    %595 = vmatprep.subr.bf16.mxu0 %v532
    %596 = vmatpush1.bf16.msra.mxu0 %v531
    %597 = vmatprep.subr.bf16.mxu0 %v534
    %598 = vmatpush1.bf16.msra.mxu0 %v533
    %599 = vmatprep.subr.bf16.mxu0 %v536
    %600 = vmatpush1.bf16.msra.mxu0 %v535
    %601 = vmatprep.subr.bf16.mxu0 %v538
    %602 = vmatpush1.bf16.msra.mxu0 %v537
    %603 = vmatprep.subr.bf16.mxu0 %v540
    %604 = vmatpush1.bf16.msra.mxu0 %v539
    %605 = vmatprep.subr.bf16.mxu0 %v542
    %606 = vmatpush1.bf16.msra.mxu0 %v541
    %607 = vmatprep.subr.bf16.mxu0 %v544
    %608 = vmatpush1.bf16.msra.mxu0 %v543
    %609 = vmatprep.subr.bf16.mxu0 %v546
    %610 = vmatpush1.bf16.msra.mxu0 %v545
    %611 = vmatprep.subr.bf16.mxu0 %v548
    %612 = vmatpush1.bf16.msra.mxu0 %v547
    %613 = vmatprep.subr.bf16.mxu0 %v550
    %614 = vmatpush1.bf16.msra.mxu0 %v549
    %615 = vmatprep.mubr.bf16.mxu0 %v137
    %616 = vmatmul.mubr.bf16.gmra.mrb[0].mxu0 %v134
    %v617 = vpop.f32.mrb[0].mxu0
    %v618 = vadd.f32 %v417, %v617
    %v619 = vpop.f32.mrb[0].mxu0
    %v620 = vadd.f32 %v419, %v619
    %v621 = vpop.f32.mrb[0].mxu0
    %v622 = vpop.f32.mrb[0].mxu0
    %623 = vdwg.mxu0
    %v624 = vsub.f32 0.0, %v618
    %v625 = vsub.f32 0.0, %v620
    %v626 = vmul.f32 %v624, 1.442695
    %v627 = vpow.pop %v626
    %v628 = vmul.f32 %v625, 1.442695
    %v629 = vpow.pop %v628
    %v630 = vadd.f32 %v627, 1.0
    %v631 = vadd.f32 %v629, 1.0
    %v632 = vrcp.pop %v630
    %v633 = vmul.f32 1.0, %v632
    %v634 = vrcp.pop %v631
    %v635 = vmul.f32 1.0, %v634
    %v638 = vcombine.low %v633, %v635
    %v640 = vunpack.c.l.s4 1983009808
    %v641 = vunpack.c.0.s8 %v640
    %v642 = vlaneseq
    %v643 = vshrl.u32 %v642, 7
    %v644 = vsub.s32 %v641, %v643
    %v645 = vrot.slane %v638, %v644
    %647 = vst [vmem:[#allocation7] sm:$0xf] %v645
    // Predicated region
    $region18: #{tpu_custom_call.1} parent=1 // pred_check
      _
    $region19: #{tpu_custom_call.1} parent=1 // pred_check_branch
      %649 = sbr.rel (0) target = $region21
    $region20: #{tpu_custom_call.1} parent=1 // pred_region
      %s651 = ssub.s32 64, 64
      %652 = vsyncadd [#allocation4], %s651
      %s654 = sshll.u32 [#allocation7], 4
      %s655 = int_to_ptr.vmem [resolvable:$true] %s654
      %657 = dma.vmem_to_hbm [thread:$0]  %s655, 64, %s2, [#allocation4]
    $region21: #{tpu_custom_call.1} parent=1 // pred_fallthru
      _
    // Predicated region
    $region22: #{tpu_custom_call.1} parent=1 // pred_check
      _
    $region23: #{tpu_custom_call.1} parent=1 // pred_check_branch
      %659 = sbr.rel (0) target = $region25
    $region24: #{tpu_custom_call.1} parent=1 // pred_region
      %660 = dma.done [#allocation4], 64
    $region25: #{tpu_custom_call.1} parent=1 // pred_fallthru
      _
    %661 = vsyncpa [#allocation3], 1
    %662 = vsyncpa [#allocation6], 1
    %663 = vsyncpa [#allocation4], 1

</llo_original>
